<compile_context>
chip_gen: v5e
topology: v5e:2x2
jax: 0.10.0
libtpu: 0.0.40
codegen_flags: <defaults>
</compile_context>

<pallas_src>
import jax
import jax.numpy as jnp
from jax.experimental import pallas as pl
from jax.experimental.pallas import tpu as pltpu


# ----------------------------------------------------------------------------
# Helpers
# ----------------------------------------------------------------------------
def _round_up(v, m):
    return (v + m - 1) // m * m


def _choose_block_b(B):
    # Lane-dense batch tile: at least 128, at most 512 rows per grid step.
    return min(512, _round_up(B, 128))


# ----------------------------------------------------------------------------
# Kernels
# ----------------------------------------------------------------------------
def _layer1_kernel(xT_ref, w1_ref, o_ref):
    # xT_ref : (D, TB)   w1_ref : (H, D)   o_ref : (1, TB)
    h = jnp.dot(w1_ref[...], xT_ref[...],
                preferred_element_type=jnp.float32)          # (H, TB)  MXU
    h = jnp.maximum(h, 0.0)                                  # ReLU      VPU
    o_ref[...] = jnp.sum(h, axis=0, keepdims=True)           # sublane reduce -> lane-dense row


def _layer2_kernel(xT_ref, w1_ref, w2_ref, b2_ref, o_ref):
    # xT_ref : (D, TB)  w1_ref : (H, D)  w2_ref : (H, 1)  b2_ref : SMEM (1,)
    h = jnp.dot(w1_ref[...], xT_ref[...],
                preferred_element_type=jnp.float32)          # (H, TB)  MXU
    h = jnp.maximum(h, 0.0)                                  # ReLU      VPU
    # (H,1) weight lane-broadcast + multiply (VPU) + sublane reduce (XLU)
    # instead of a wasteful (TB,H)@(H,1) MXU matmul.
    y = jnp.sum(h * w2_ref[...], axis=0, keepdims=True)      # (1, TB)
    o_ref[...] = y + b2_ref[0]                               # scalar bias from SMEM


# ----------------------------------------------------------------------------
# Wrappers
# ----------------------------------------------------------------------------
@jax.jit
def network_forward_layer1(x, w1):
    """y = sum(relu(x @ w1.T), axis=1) -> (B,).  w1 is PyTorch fc1.weight (H, D)."""
    B, D = x.shape
    H, D2 = w1.shape
    assert D == D2

    block_b = _choose_block_b(B)
    B_pad = _round_up(B, block_b)
    D_pad = _round_up(D, 8)      # sublane-dense contraction dim
    H_pad = _round_up(H, 8)      # sublane-dense hidden dim

    x_t = jnp.zeros((D_pad, B_pad), jnp.float32).at[:D, :B].set(
        x.astype(jnp.float32).T)
    w1_p = jnp.zeros((H_pad, D_pad), jnp.float32).at[:H, :D].set(
        w1.astype(jnp.float32))

    out = pl.pallas_call(
        _layer1_kernel,
        out_shape=jax.ShapeDtypeStruct((1, B_pad), jnp.float32),
        grid_spec=pltpu.PrefetchScalarGridSpec(
            num_scalar_prefetch=0,
            grid=(B_pad // block_b,),
            in_specs=[
                pl.BlockSpec((D_pad, block_b), lambda i: (0, i)),
                pl.BlockSpec((H_pad, D_pad), lambda i: (0, 0)),
            ],
            out_specs=pl.BlockSpec((1, block_b), lambda i: (0, i)),
        ),
        compiler_params=pltpu.CompilerParams(
            dimension_semantics=("parallel",)),
    )(x_t, w1_p)
    return out[0, :B]                      # (B,), matches torch.sum(..., dim=1)


@jax.jit
def network_forward_layer2(x, w1, w2, b2):
    """y = relu(x @ w1.T) @ w2.T + b2 -> (B, 1).  w2 is fc2.weight (1, H), b2 is (1,)."""
    B, D = x.shape
    H, D2 = w1.shape
    assert D == D2

    block_b = _choose_block_b(B)
    B_pad = _round_up(B, block_b)
    D_pad = _round_up(D, 8)
    H_pad = _round_up(H, 8)

    x_t = jnp.zeros((D_pad, B_pad), jnp.float32).at[:D, :B].set(
        x.astype(jnp.float32).T)
    w1_p = jnp.zeros((H_pad, D_pad), jnp.float32).at[:H, :D].set(
        w1.astype(jnp.float32))
    w2_col = jnp.zeros((H_pad, 1), jnp.float32).at[:H, 0].set(
        w2.reshape(-1).astype(jnp.float32))
    b2_arr = b2.reshape(1).astype(jnp.float32)

    out = pl.pallas_call(
        _layer2_kernel,
        out_shape=jax.ShapeDtypeStruct((1, B_pad), jnp.float32),
        grid_spec=pltpu.PrefetchScalarGridSpec(
            num_scalar_prefetch=0,
            grid=(B_pad // block_b,),
            in_specs=[
                pl.BlockSpec((D_pad, block_b), lambda i: (0, i)),
                pl.BlockSpec((H_pad, D_pad), lambda i: (0, 0)),
                pl.BlockSpec((H_pad, 1), lambda i: (0, 0)),
                pl.BlockSpec(memory_space=pltpu.MemorySpace.SMEM),
            ],
            out_specs=pl.BlockSpec((1, block_b), lambda i: (0, i)),
        ),
        compiler_params=pltpu.CompilerParams(
            dimension_semantics=("parallel",)),
    )(x_t, w1_p, w2_col, b2_arr)
    return out[0, :B].reshape(B, 1)        # (B, 1), matches nn.Linear(H, 1)


# ----------------------------------------------------------------------------
# Main
# ----------------------------------------------------------------------------
if __name__ == "__main__":
    key = jax.random.PRNGKey(0)
    k_x, k_w1, k_w2, k_b2 = jax.random.split(key, 4)

    batch = 8
    dim = 32
    hidden = 100   # real hidden_size of the PyTorch module

    # Deterministic parameter init (Kaiming-uniform-like bounds, synthetic).
    x = jax.random.normal(k_x, (batch, dim), dtype=jnp.float32)
    bound1 = 1.0 / jnp.sqrt(dim)
    w1 = jax.random.uniform(k_w1, (hidden, dim), jnp.float32, -bound1, bound1)
    bound2 = 1.0 / jnp.sqrt(hidden)
    w2 = jax.random.uniform(k_w2, (1, hidden), jnp.float32, -bound2, bound2)
    b2 = jax.random.uniform(k_b2, (1,), jnp.float32, -bound2, bound2)

    # ---- layer == 1 path (default in the PyTorch module) ----
    y1 = network_forward_layer1(x, w1)
    jax.block_until_ready(y1)
    y1_ref = jnp.sum(jnp.maximum(x @ w1.T, 0.0), axis=1)
    assert y1.shape == (batch,)
    assert jnp.allclose(y1, y1_ref, rtol=1e-4, atol=1e-4)

    # ---- layer == 2 path ----
    y2 = network_forward_layer2(x, w1, w2, b2)
    jax.block_until_ready(y2)
    y2_ref = jnp.maximum(x @ w1.T, 0.0) @ w2.T + b2.reshape(1, 1)
    assert y2.shape == (batch, 1)
    assert jnp.allclose(y2, y2_ref, rtol=1e-4, atol=1e-4)

    print("KERNEL_OK")
</pallas_src>

<mosaic_0001>
module attributes {stable_mosaic.version = 11 : i64} {
  func.func @_layer1_kernel(%arg0: i32, %arg1: memref<32x128xf32, #tpu.memory_space<vmem>>, %arg2: memref<104x32xf32, #tpu.memory_space<vmem>>, %arg3: memref<1x128xf32, #tpu.memory_space<vmem>>) attributes {dimension_semantics = [#tpu.dimension_semantics<parallel>], iteration_bounds = array<i64: 1>, scalar_prefetch = 0 : i64, scratch_operands = 0 : i64, tpu.core_type = #tpu.core_type<tc>, window_params = [{transform_indices = @transform_0, window_bounds = array<i64: 32, 128>}, {pipeline_mode = #tpu.pipeline_mode<synchronous>, transform_indices = @transform_1, window_bounds = array<i64: 104, 32>}, {transform_indices = @transform_2, window_bounds = array<i64: 1, 128>}]} {
    %c0 = arith.constant 0 : index
    %c0_0 = arith.constant 0 : index
    %0 = vector.load %arg2[%c0, %c0_0] : memref<104x32xf32, #tpu.memory_space<vmem>>, vector<104x32xf32>
    %c0_1 = arith.constant 0 : index
    %c0_2 = arith.constant 0 : index
    %1 = vector.load %arg1[%c0_1, %c0_2] : memref<32x128xf32, #tpu.memory_space<vmem>>, vector<32x128xf32>
    %cst = arith.constant dense<0.000000e+00> : vector<104x128xf32>
    %2 = tpu.matmul %0, %1, %cst {dimension_numbers = #tpu.dot_dimension_numbers<[1], [0], [0], [1], [0, 0, 1, 1], [], []>} : vector<104x32xf32>, vector<32x128xf32>, vector<104x128xf32> -> vector<104x128xf32>
    %cst_3 = arith.constant 0.000000e+00 : f32
    %3 = vector.broadcast %cst_3 : f32 to vector<104x128xf32>
    %4 = arith.maximumf %2, %3 : vector<104x128xf32>
    %cst_4 = arith.constant dense<0.000000e+00> : vector<128xf32>
    %5 = vector.multi_reduction <add>, %4, %cst_4 [0] : vector<104x128xf32> to vector<128xf32>
    %6 = vector.shape_cast %5 : vector<128xf32> to vector<1x128xf32>
    %c0_5 = arith.constant 0 : index
    %c0_6 = arith.constant 0 : index
    %7 = vector.load %arg3[%c0_5, %c0_6] : memref<1x128xf32, #tpu.memory_space<vmem>>, vector<1x128xf32>
    tpu.vector_store %arg3[%c0_5, %c0_6], %6 {strides = array<i32>} : memref<1x128xf32, #tpu.memory_space<vmem>>, vector<1x128xf32>,
    return
  }
  func.func @transform_0(%arg0: i32) -> (i32, i32) {
    %c0_i32 = arith.constant 0 : i32
    %c0_i32_0 = arith.constant 0 : i32
    return %c0_i32, %arg0 : i32, i32
  }
  func.func @transform_1(%arg0: i32) -> (i32, i32) {
    %c0_i32 = arith.constant 0 : i32
    %c0_i32_0 = arith.constant 0 : i32
    %c0_i32_1 = arith.constant 0 : i32
    return %c0_i32, %c0_i32_0 : i32, i32
  }
  func.func @transform_2(%arg0: i32) -> (i32, i32) {
    %c0_i32 = arith.constant 0 : i32
    %c0_i32_0 = arith.constant 0 : i32
    return %c0_i32, %arg0 : i32, i32
  }
}

</mosaic_0001>

<llo_original>
// kernel: network_forward_layer1.1
$region0: #{network_forward_layer1.1}
  #allocation0 [shape = 'u32[]', space=smem, size = 0x4, offset = 0x4, fixed_abs, tag = 'smem constant byte address 0x4 - core index']
  #allocation1 [shape = 'u32[72,128]{1,0:T(1,128)}', space=vmem, size = 0x9000, scoped, tag = 'internal scratch']
  %s0 = inlined_call_operand.vmem [shape: f32[32,128], index: 0, kind: input, shape index: {}]
  %s1 = inlined_call_operand.vmem [shape: f32[104,32], index: 1, kind: input, shape index: {}]
  %s2 = inlined_call_operand.vmem [shape: f32[1,128], index: 2, kind: output, shape index: {}]
  %s3 = sld [smem:[#allocation0]]
  $region18: #{network_forward_layer1.1} parent=0
    _
  %s5 = ssub.s32 1, %s3
  %s6 = scalar_select 0, %s5, %s3
  // Predicated region
  $region2: #{network_forward_layer1.1} parent=0 // pred_check
    _
  $region3: #{network_forward_layer1.1} parent=0 // pred_check_branch
    %8 = sbr.rel (0) target = $region5
  $region4: #{network_forward_layer1.1} parent=0 // pred_region
    _
  $region5: #{network_forward_layer1.1} parent=0 // pred_fallthru
    _
  // Predicated region
  $region6: #{network_forward_layer1.1} parent=0 // pred_check
    _
  $region7: #{network_forward_layer1.1} parent=0 // pred_check_branch
    %10 = sbr.rel (0) target = $region9
  $region8: #{network_forward_layer1.1} parent=0 // pred_region
    _
  $region9: #{network_forward_layer1.1} parent=0 // pred_fallthru
    _
  %v11 = vld [vmem:[%s1] sm:$0xff]
  %v12 = vld [vmem:[%s1 + $0x8] sm:$0xff]
  %v13 = vld [vmem:[%s1 + $0x10] sm:$0xff]
  %v14 = vld [vmem:[%s1 + $0x18] sm:$0xff]
  %v15 = vld [vmem:[%s1 + $0x20] sm:$0xff]
  %v16 = vld [vmem:[%s1 + $0x28] sm:$0xff]
  %v17 = vld [vmem:[%s1 + $0x30] sm:$0xff]
  %v18 = vld [vmem:[%s1 + $0x38] sm:$0xff]
  %v19 = vld [vmem:[%s1 + $0x40] sm:$0xff]
  %v20 = vld [vmem:[%s1 + $0x48] sm:$0xff]
  %v21 = vld [vmem:[%s1 + $0x50] sm:$0xff]
  %v22 = vld [vmem:[%s1 + $0x58] sm:$0xff]
  %v23 = vld [vmem:[%s1 + $0x60] sm:$0xff]
  %v24 = vld [vmem:[%s0] sm:$0xff]
  %v25 = vld [vmem:[%s0 + $0x8] sm:$0xff]
  %v26 = vld [vmem:[%s0 + $0x10] sm:$0xff]
  %v27 = vld [vmem:[%s0 + $0x18] sm:$0xff]
  %vm28 = vcmask 261120
  %v30 = vsel %vm28, %v11, 0
  %v33 = vsel %vm28, %v12, 0
  %v36 = vsel %vm28, %v13, 0
  %v39 = vsel %vm28, %v14, 0
  %v42 = vsel %vm28, %v15, 0
  %v45 = vsel %vm28, %v16, 0
  %v48 = vsel %vm28, %v17, 0
  %v51 = vsel %vm28, %v18, 0
  %v54 = vsel %vm28, %v19, 0
  %v57 = vsel %vm28, %v20, 0
  %v60 = vsel %vm28, %v21, 0
  %v63 = vsel %vm28, %v22, 0
  %v66 = vsel %vm28, %v23, 0
  %68 = vmatpush.msra.mxu0 0.0
  %69 = vmatpush.msra.mxu0 0.0
  %70 = vmatpush.msra.mxu0 0.0
  %71 = vmatpush.msra.mxu0 0.0
  %72 = vmatpush.msra.mxu0 0.0
  %73 = vmatpush.msra.mxu0 0.0
  %74 = vmatpush.msra.mxu0 0.0
  %75 = vmatpush.msra.mxu0 0.0
  %76 = vmatpush.msra.mxu0 0.0
  %77 = vmatpush.msra.mxu0 0.0
  %78 = vmatpush.msra.mxu0 0.0
  %79 = vmatpush.msra.mxu0 0.0
  %80 = vmatpush.msra.mxu0 %v27
  %81 = vmatpush.msra.mxu0 %v26
  %82 = vmatpush.msra.mxu0 %v25
  %83 = vmatpush.msra.mxu0 %v24
  %84 = vmatmul.f32.gmra.mxu0 %v30
  %v85 = vpop.f32.mrf.mxu0
  %v86 = vadd.f32 0.0, %v85
  %87 = vmatmul.f32.gmra.mxu0 %v33
  %v88 = vpop.f32.mrf.mxu0
  %v89 = vadd.f32 0.0, %v88
  %90 = vmatmul.f32.gmra.mxu0 %v36
  %v91 = vpop.f32.mrf.mxu0
  %v92 = vadd.f32 0.0, %v91
  %93 = vmatmul.f32.gmra.mxu0 %v39
  %v94 = vpop.f32.mrf.mxu0
  %v95 = vadd.f32 0.0, %v94
  %96 = vmatmul.f32.gmra.mxu0 %v42
  %v97 = vpop.f32.mrf.mxu0
  %v98 = vadd.f32 0.0, %v97
  %99 = vmatmul.f32.gmra.mxu0 %v45
  %v100 = vpop.f32.mrf.mxu0
  %v101 = vadd.f32 0.0, %v100
  %102 = vmatmul.f32.gmra.mxu0 %v48
  %v103 = vpop.f32.mrf.mxu0
  %v104 = vadd.f32 0.0, %v103
  %105 = vmatmul.f32.gmra.mxu0 %v51
  %v106 = vpop.f32.mrf.mxu0
  %v107 = vadd.f32 0.0, %v106
  %108 = vmatmul.f32.gmra.mxu0 %v54
  %v109 = vpop.f32.mrf.mxu0
  %v110 = vadd.f32 0.0, %v109
  %111 = vmatmul.f32.gmra.mxu0 %v57
  %v112 = vpop.f32.mrf.mxu0
  %v113 = vadd.f32 0.0, %v112
  %114 = vmatmul.f32.gmra.mxu0 %v60
  %v115 = vpop.f32.mrf.mxu0
  %v116 = vadd.f32 0.0, %v115
  %117 = vmatmul.f32.gmra.mxu0 %v63
  %v118 = vpop.f32.mrf.mxu0
  %v119 = vadd.f32 0.0, %v118
  %120 = vmatmul.f32.gmra.mxu0 %v66
  %v121 = vpop.f32.mrf.mxu0
  %v122 = vadd.f32 0.0, %v121
  %123 = vdwg.mxu0
  %v124 = vmax.f32 %v86, 0.0
  %v125 = vmax.f32 %v89, 0.0
  %v126 = vmax.f32 %v92, 0.0
  %v127 = vmax.f32 %v95, 0.0
  %v128 = vmax.f32 %v98, 0.0
  %v129 = vmax.f32 %v101, 0.0
  %v130 = vmax.f32 %v104, 0.0
  %v131 = vmax.f32 %v107, 0.0
  %v132 = vmax.f32 %v110, 0.0
  %v133 = vmax.f32 %v113, 0.0
  %v134 = vmax.f32 %v116, 0.0
  %v135 = vmax.f32 %v119, 0.0
  %v136 = vmax.f32 %v122, 0.0
  %v137 = vadd.f32 %v124, %v125
  %v138 = vadd.f32 %v137, %v126
  %v139 = vadd.f32 %v138, %v127
  %v140 = vadd.f32 %v139, %v128
  %v141 = vadd.f32 %v140, %v129
  %v142 = vadd.f32 %v141, %v130
  %v143 = vadd.f32 %v142, %v131
  %v144 = vadd.f32 %v143, %v132
  %v145 = vadd.f32 %v144, %v133
  %v146 = vadd.f32 %v145, %v134
  %v147 = vadd.f32 %v146, %v135
  %v148 = vadd.f32 %v147, %v136
  %v149 = vrot.slane %v148, 4
  %v150 = vadd.f32 %v148, %v149
  %v151 = vrot.slane %v150, 2
  %v152 = vadd.f32 %v150, %v151
  %v153 = vrot.slane %v152, 1
  %v154 = vadd.f32 %v152, %v153
  %155 = vst [vmem:[%s2] sm:$0x1] %v154
  // Predicated region
  $region10: #{network_forward_layer1.1} parent=0 // pred_check
    _
  $region11: #{network_forward_layer1.1} parent=0 // pred_check_branch
    %157 = sbr.rel (0) target = $region13
  $region12: #{network_forward_layer1.1} parent=0 // pred_region
    _
  $region13: #{network_forward_layer1.1} parent=0 // pred_fallthru
    _
  // Predicated region
  $region14: #{network_forward_layer1.1} parent=0 // pred_check
    _
  $region15: #{network_forward_layer1.1} parent=0 // pred_check_branch
    %159 = sbr.rel (0) target = $region17
  $region16: #{network_forward_layer1.1} parent=0 // pred_region
    _
  $region17: #{network_forward_layer1.1} parent=0 // pred_fallthru
    _

</llo_original>
